<compile_context>
chip_gen: v7x
topology: tpu7x:2x2x1
jax: 0.10.0
libtpu: 0.0.40
codegen_flags: <defaults>
</compile_context>

<pallas_src>
import functools

import jax
import jax.numpy as jnp
from jax import lax
from jax.experimental import pallas as pl
from jax.experimental.pallas import tpu as pltpu


_MIB = 1024 * 1024


# --------------------------- tiling helpers ---------------------------
def _largest_tile_divisor(total, upper, align):
    """Largest divisor of `total` that is a multiple of `align` and <= upper (0 if none)."""
    best = 0
    t = align
    upper = min(upper, total)
    while t <= upper:
        if total % t == 0:
            best = t
        t += align
    return best


def _round_down_multiple(x, align):
    return max(align, (x // align) * align)


def _choose_reduction_tiling(total, row_bytes, per_block_bytes):
    """Pick a lane-axis (reduction) tile under a per-block VMEM budget.

    Returns (tile, padded_total). padded_total > total means the caller must
    zero-pad the reduction axis (zeros contribute nothing to the matmuls).
    The tile is either the full axis or a multiple of 128 (lane width).
    """
    max_t = _round_down_multiple(per_block_bytes // row_bytes, 128)
    if total <= max_t:
        return total, total                       # single step, no padding
    div = _largest_tile_divisor(total, max_t, 128)
    if div >= min(max_t, 512):
        return div, total                         # clean divisor tiling, no padding
    t = max_t                                     # pad up to a multiple of a big tile
    padded = -(-total // t) * t
    return t, padded


# --------- Kernel 1: gram (content + style) + L1 row-normalize ---------
def _gram_pair_kernel(c_ref, s_ref, gc_ref, gs_ref, *, scale, use_bf16):
    # c_ref/s_ref : (1, C, t_hw)    gc_ref/gs_ref : (1, C, C) f32 (resident accumulators)
    k = pl.program_id(1)

    @pl.when(k == 0)
    def _():
        gc_ref[...] = jnp.zeros_like(gc_ref)
        gs_ref[...] = jnp.zeros_like(gs_ref)

    def accumulate(x_ref, g_ref):
        f = x_ref[0]                                          # (C, t_hw)
        if use_bf16:
            f = f.astype(jnp.bfloat16)                        # native MXU dtype; f32 acc
        # NT matmul: contract both operands' last dims -> f @ f^T without an
        # explicit transpose of the (C, t_hw) tile.
        g_ref[0] += lax.dot_general(
            f, f,
            dimension_numbers=(((1,), (1,)), ((), ())),
            preferred_element_type=jnp.float32,
        )

    accumulate(c_ref, gc_ref)
    accumulate(s_ref, gs_ref)

    @pl.when(k == pl.num_programs(1) - 1)
    def _():
        def finalize(g_ref):
            g = g_ref[0] * scale                              # gram / (C*H*W_original)
            l1 = jnp.sum(jnp.abs(g), axis=-1, keepdims=True)  # (C, 1) L1 row norms
            inv = pl.reciprocal(jnp.maximum(l1, 1e-12), approx=False)
            g_ref[0] = g * inv                                # F.normalize(p=1, dim=-1)

        finalize(gc_ref)
        finalize(gs_ref)


def gram_l1_normalized_pair(content, style, *, t_hw, scale):
    """content, style: (N, C, HW_pad) -> two (N, C, C) f32 L1-row-normalized grams."""
    N, C, HW = content.shape
    n_k = HW // t_hw
    use_bf16 = (C >= 256) and (content.dtype == jnp.float32)

    # VMEM footprint: 2 inputs x 2 double-buffers x (C*t_hw*4) + 2 outputs x 2 x (C*C*4)
    vmem_needed = 4 * C * t_hw * 4 + 4 * C * C * 4
    vmem_limit = min(50 * _MIB, max(32 * _MIB, vmem_needed + 8 * _MIB))

    kernel = functools.partial(_gram_pair_kernel, scale=scale, use_bf16=use_bf16)
    return pl.pallas_call(
        kernel,
        out_shape=(
            jax.ShapeDtypeStruct((N, C, C), jnp.float32),
            jax.ShapeDtypeStruct((N, C, C), jnp.float32),
        ),
        grid=(N, n_k),
        in_specs=[
            pl.BlockSpec((1, C, t_hw), lambda i, k: (i, 0, k)),
            pl.BlockSpec((1, C, t_hw), lambda i, k: (i, 0, k)),
        ],
        out_specs=(
            pl.BlockSpec((1, C, C), lambda i, k: (i, 0, 0)),
            pl.BlockSpec((1, C, C), lambda i, k: (i, 0, 0)),
        ),
        compiler_params=pltpu.CompilerParams(
            dimension_semantics=("parallel", "arbitrary"),
            vmem_limit_bytes=vmem_limit,
        ),
    )(content, style)


# --------- Kernel 2: pairwise squared distances (norms fused in) ---------
def _pairwise_kernel(fc_ref, fs_ref, out_ref, nc_ref, ns_ref):
    # fc_ref : (t_bi, t_d)   fs_ref : (B, t_d)   out_ref : (t_bi, B) f32 (resident)
    # nc_ref : (t_bi, 1) f32 scratch              ns_ref : (1, B) f32 scratch
    k = pl.program_id(1)

    @pl.when(k == 0)
    def _():
        out_ref[...] = jnp.zeros_like(out_ref)
        nc_ref[...] = jnp.zeros_like(nc_ref)
        ns_ref[...] = jnp.zeros_like(ns_ref)

    fc = fc_ref[...]
    fs = fs_ref[...]
    out_ref[...] += lax.dot_general(            # <fc_i, fs_j> tiles on the MXU
        fc, fs,
        dimension_numbers=(((1,), (1,)), ((), ())),
        preferred_element_type=jnp.float32,
    )
    nc_ref[...] += jnp.sum(fc * fc, axis=-1, keepdims=True)
    # ||fs_j||^2 accumulated directly in the (1, B) orientation via a ones-row
    # matmul (avoids a (B,1)->(1,B) relayout; hides under the MXU dot above).
    ones_row = jnp.ones((1, fs.shape[-1]), dtype=fs.dtype)
    ns_ref[...] += lax.dot_general(
        ones_row, fs * fs,
        dimension_numbers=(((1,), (1,)), ((), ())),
        preferred_element_type=jnp.float32,
    )

    @pl.when(k == pl.num_programs(1) - 1)
    def _():
        # ||fc_i - fs_j||^2 = ||fc_i||^2 + ||fs_j||^2 - 2<fc_i, fs_j>
        # Clamp at 0: the rewrite can go slightly negative when content/style
        # grams are near-identical (catastrophic cancellation); MSE is >= 0.
        sq = nc_ref[...] + ns_ref[...] - 2.0 * out_ref[...]
        out_ref[...] = jnp.maximum(sq, 0.0)


def pairwise_mse(fc, fs):
    """fc, fs: (B, D) f32 -> (B, B) pairwise squared distances."""
    B, D = fc.shape
    # D tile from a VMEM budget (~8 MiB per fs block); pad D with zeros if needed
    # (zero columns add nothing to the dots or the norms).
    t_d, D_pad = _choose_reduction_tiling(D, B * 4, 8 * _MIB)
    if D_pad != D:
        fc = jnp.pad(fc, ((0, 0), (0, D_pad - D)))
        fs = jnp.pad(fs, ((0, 0), (0, D_pad - D)))
    n_k = D_pad // t_d

    # Tile the output rows on a leading "parallel" axis so v7x megacore can
    # shard the work; keep a single full-B block for small batches.
    t_bi = 8 if (B % 8 == 0 and B >= 16) else B
    n_bi = B // t_bi

    vmem_needed = 2 * (t_bi + B) * t_d * 4 + 2 * t_bi * B * 4
    vmem_limit = min(50 * _MIB, max(32 * _MIB, vmem_needed + 8 * _MIB))

    return pl.pallas_call(
        _pairwise_kernel,
        out_shape=jax.ShapeDtypeStruct((B, B), jnp.float32),
        grid=(n_bi, n_k),
        in_specs=[
            pl.BlockSpec((t_bi, t_d), lambda bi, k: (bi, k)),
            pl.BlockSpec((B, t_d), lambda bi, k: (0, k)),
        ],
        out_specs=pl.BlockSpec((t_bi, B), lambda bi, k: (bi, 0)),
        scratch_shapes=[
            pltpu.VMEM((t_bi, 1), jnp.float32),
            pltpu.VMEM((1, B), jnp.float32),
        ],
        compiler_params=pltpu.CompilerParams(
            dimension_semantics=("parallel", "arbitrary"),
            vmem_limit_bytes=vmem_limit,
        ),
    )(fc, fs)


# ------------------------------ Wrapper ------------------------------
def style_contrastive(content, style):
    """content, style: (B, C, H, W) float32 (NCHW). Returns (B, B) float32."""
    B, C, H, W = content.shape
    HW = H * W
    c = content.reshape(B, C, HW)   # free reshape; NO concatenate (saves a full HBM pass)
    s = style.reshape(B, C, HW)

    # HW tile from a VMEM budget (~4 MiB per input block); zero-pad HW only when
    # no friendly divisor exists. Scale stays 1/(C*HW_original) so padding is exact.
    t_hw, HW_pad = _choose_reduction_tiling(HW, C * 4, 4 * _MIB)
    if HW_pad != HW:
        c = jnp.pad(c, ((0, 0), (0, 0), (0, HW_pad - HW)))
        s = jnp.pad(s, ((0, 0), (0, 0), (0, HW_pad - HW)))

    gc, gs = gram_l1_normalized_pair(c, s, t_hw=t_hw, scale=1.0 / float(C * HW))
    fc = gc.reshape(B, C * C)
    fs = gs.reshape(B, C * C)
    return pairwise_mse(fc, fs)


# --------------- Pure-JAX reference for validation ---------------
def _reference(content, style):
    B, C, H, W = content.shape

    def gram(x):
        f = x.reshape(B, C, H * W)
        return jnp.einsum("bcl,bdl->bcd", f, f) / (C * H * W)

    def l1norm(g):
        n = jnp.sum(jnp.abs(g), axis=-1, keepdims=True)
        return g / jnp.maximum(n, 1e-12)

    f_c = l1norm(gram(content)).reshape(B, 1, -1)
    f_s = l1norm(gram(style)).reshape(1, B, -1)
    return ((f_c - f_s) ** 2).sum(axis=2).reshape(B, B)


if __name__ == "__main__":
    key = jax.random.PRNGKey(0)
    k1, k2 = jax.random.split(key)
    B, C, H, W = 2, 4, 16, 16
    content = jax.random.normal(k1, (B, C, H, W), dtype=jnp.float32)
    style = jax.random.normal(k2, (B, C, H, W), dtype=jnp.float32)

    out = style_contrastive(content, style)
    out = jax.block_until_ready(out)

    ref = _reference(content, style)
    assert out.shape == (B, B)
    assert jnp.allclose(out, ref, rtol=1e-4, atol=1e-5), (out, ref)

    print("KERNEL_OK")
</pallas_src>

<mosaic_0001>
module attributes {stable_mosaic.version = 11 : i64} {
  func.func @_gram_pair_kernel(%arg0: i32, %arg1: i32, %arg2: memref<1x4x256xf32, #tpu.memory_space<vmem>>, %arg3: memref<1x4x256xf32, #tpu.memory_space<vmem>>, %arg4: memref<1x4x4xf32, #tpu.memory_space<vmem>>, %arg5: memref<1x4x4xf32, #tpu.memory_space<vmem>>) attributes {dimension_semantics = [#tpu.dimension_semantics<parallel>, #tpu.dimension_semantics<arbitrary>], iteration_bounds = array<i64: 2, 1>, scalar_prefetch = 0 : i64, scratch_operands = 0 : i64, tpu.core_type = #tpu.core_type<tc>, window_params = [{transform_indices = @transform_0, window_bounds = array<i64: 1, 4, 256>}, {transform_indices = @transform_1, window_bounds = array<i64: 1, 4, 256>}, {transform_indices = @transform_2, window_bounds = array<i64: 1, 4, 4>}, {transform_indices = @transform_3, window_bounds = array<i64: 1, 4, 4>}]} {
    %c0_i32 = arith.constant 0 : i32
    %0 = arith.cmpi eq, %arg1, %c0_i32 : i32
    %1 = arith.extui %0 : i1 to i32
    %c0_i32_0 = arith.constant 0 : i32
    %2 = arith.cmpi ne, %1, %c0_i32_0 : i32
    scf.if %2 {
      %cst_21 = arith.constant 0.000000e+00 : f32
      %24 = vector.broadcast %cst_21 : f32 to vector<1x4x4xf32>
      %c0_22 = arith.constant 0 : index
      %c0_23 = arith.constant 0 : index
      %c0_24 = arith.constant 0 : index
      %25 = vector.load %arg4[%c0_22, %c0_23, %c0_24] : memref<1x4x4xf32, #tpu.memory_space<vmem>>, vector<1x4x4xf32>
      tpu.vector_store %arg4[%c0_22, %c0_23, %c0_24], %24 {strides = array<i32>} : memref<1x4x4xf32, #tpu.memory_space<vmem>>, vector<1x4x4xf32>,
      %cst_25 = arith.constant 0.000000e+00 : f32
      %26 = vector.broadcast %cst_25 : f32 to vector<1x4x4xf32>
      %c0_26 = arith.constant 0 : index
      %c0_27 = arith.constant 0 : index
      %c0_28 = arith.constant 0 : index
      %27 = vector.load %arg5[%c0_26, %c0_27, %c0_28] : memref<1x4x4xf32, #tpu.memory_space<vmem>>, vector<1x4x4xf32>
      tpu.vector_store %arg5[%c0_26, %c0_27, %c0_28], %26 {strides = array<i32>} : memref<1x4x4xf32, #tpu.memory_space<vmem>>, vector<1x4x4xf32>,
    } else {
    }
    %c0 = arith.constant 0 : index
    %c0_1 = arith.constant 0 : index
    %c0_2 = arith.constant 0 : index
    %3 = vector.load %arg2[%c0, %c0_1, %c0_2] : memref<1x4x256xf32, #tpu.memory_space<vmem>>, vector<1x4x256xf32>
    %4 = vector.shape_cast %3 : vector<1x4x256xf32> to vector<4x256xf32>
    %c0_3 = arith.constant 0 : index
    %c0_4 = arith.constant 0 : index
    %c0_5 = arith.constant 0 : index
    %5 = vector.load %arg4[%c0_3, %c0_4, %c0_5] : memref<1x4x4xf32, #tpu.memory_space<vmem>>, vector<1x4x4xf32>
    %6 = vector.shape_cast %5 : vector<1x4x4xf32> to vector<4x4xf32>
    %cst = arith.constant dense<0.000000e+00> : vector<4x4xf32>
    %7 = tpu.matmul %4, %4, %cst {dimension_numbers = #tpu.dot_dimension_numbers<[1], [1], [0], [0], [0, 0, 1, 0], [], []>} : vector<4x256xf32>, vector<4x256xf32>, vector<4x4xf32> -> vector<4x4xf32>
    %8 = arith.addf %6, %7 : vector<4x4xf32>
    %c0_6 = arith.constant 0 : index
    %c0_7 = arith.constant 0 : index
    %c0_8 = arith.constant 0 : index
    %9 = vector.load %arg4[%c0_6, %c0_7, %c0_8] : memref<1x4x4xf32, #tpu.memory_space<vmem>>, vector<1x4x4xf32>
    %10 = vector.shape_cast %9 : vector<1x4x4xf32> to vector<4x4xf32>
    %11 = vector.shape_cast %8 : vector<4x4xf32> to vector<1x4x4xf32>
    tpu.vector_store %arg4[%c0_6, %c0_7, %c0_8], %11 {strides = array<i32>} : memref<1x4x4xf32, #tpu.memory_space<vmem>>, vector<1x4x4xf32>,
    %c0_9 = arith.constant 0 : index
    %c0_10 = arith.constant 0 : index
    %c0_11 = arith.constant 0 : index
    %12 = vector.load %arg3[%c0_9, %c0_10, %c0_11] : memref<1x4x256xf32, #tpu.memory_space<vmem>>, vector<1x4x256xf32>
    %13 = vector.shape_cast %12 : vector<1x4x256xf32> to vector<4x256xf32>
    %c0_12 = arith.constant 0 : index
    %c0_13 = arith.constant 0 : index
    %c0_14 = arith.constant 0 : index
    %14 = vector.load %arg5[%c0_12, %c0_13, %c0_14] : memref<1x4x4xf32, #tpu.memory_space<vmem>>, vector<1x4x4xf32>
    %15 = vector.shape_cast %14 : vector<1x4x4xf32> to vector<4x4xf32>
    %cst_15 = arith.constant dense<0.000000e+00> : vector<4x4xf32>
    %16 = tpu.matmul %13, %13, %cst_15 {dimension_numbers = #tpu.dot_dimension_numbers<[1], [1], [0], [0], [0, 0, 1, 0], [], []>} : vector<4x256xf32>, vector<4x256xf32>, vector<4x4xf32> -> vector<4x4xf32>
    %17 = arith.addf %15, %16 : vector<4x4xf32>
    %c0_16 = arith.constant 0 : index
    %c0_17 = arith.constant 0 : index
    %c0_18 = arith.constant 0 : index
    %18 = vector.load %arg5[%c0_16, %c0_17, %c0_18] : memref<1x4x4xf32, #tpu.memory_space<vmem>>, vector<1x4x4xf32>
    %19 = vector.shape_cast %18 : vector<1x4x4xf32> to vector<4x4xf32>
    %20 = vector.shape_cast %17 : vector<4x4xf32> to vector<1x4x4xf32>
    tpu.vector_store %arg5[%c0_16, %c0_17, %c0_18], %20 {strides = array<i32>} : memref<1x4x4xf32, #tpu.memory_space<vmem>>, vector<1x4x4xf32>,
    %c0_i32_19 = arith.constant 0 : i32
    %21 = arith.cmpi eq, %arg1, %c0_i32_19 : i32
    %22 = arith.extui %21 : i1 to i32
    %c0_i32_20 = arith.constant 0 : i32
    %23 = arith.cmpi ne, %22, %c0_i32_20 : i32
    scf.if %23 {
      %c0_21 = arith.constant 0 : index
      %c0_22 = arith.constant 0 : index
      %c0_23 = arith.constant 0 : index
      %24 = vector.load %arg4[%c0_21, %c0_22, %c0_23] : memref<1x4x4xf32, #tpu.memory_space<vmem>>, vector<1x4x4xf32>
      %25 = vector.shape_cast %24 : vector<1x4x4xf32> to vector<4x4xf32>
      %cst_24 = arith.constant 9.765625E-4 : f32
      %26 = vector.broadcast %cst_24 : f32 to vector<4x4xf32>
      %27 = arith.mulf %25, %26 : vector<4x4xf32>
      %28 = math.absf %27 : vector<4x4xf32>
      %cst_25 = arith.constant dense<0.000000e+00> : vector<4xf32>
      %29 = vector.multi_reduction <add>, %28, %cst_25 [1] : vector<4x4xf32> to vector<4xf32>
      %30 = vector.shape_cast %29 : vector<4xf32> to vector<4x1xf32>
      %cst_26 = arith.constant 9.99999996E-13 : f32
      %31 = vector.broadcast %cst_26 : f32 to vector<4x1xf32>
      %32 = arith.maximumf %30, %31 : vector<4x1xf32>
      %33 = tpu.reciprocal %32 : vector<4x1xf32> -> vector<4x1xf32>
      %34 = vector.broadcast %33 : vector<4x1xf32> to vector<4x4xf32>
      %35 = arith.mulf %27, %34 : vector<4x4xf32>
      %c0_27 = arith.constant 0 : index
      %c0_28 = arith.constant 0 : index
      %c0_29 = arith.constant 0 : index
      %36 = vector.load %arg4[%c0_27, %c0_28, %c0_29] : memref<1x4x4xf32, #tpu.memory_space<vmem>>, vector<1x4x4xf32>
      %37 = vector.shape_cast %36 : vector<1x4x4xf32> to vector<4x4xf32>
      %38 = vector.shape_cast %35 : vector<4x4xf32> to vector<1x4x4xf32>
      tpu.vector_store %arg4[%c0_27, %c0_28, %c0_29], %38 {strides = array<i32>} : memref<1x4x4xf32, #tpu.memory_space<vmem>>, vector<1x4x4xf32>,
      %c0_30 = arith.constant 0 : index
      %c0_31 = arith.constant 0 : index
      %c0_32 = arith.constant 0 : index
      %39 = vector.load %arg5[%c0_30, %c0_31, %c0_32] : memref<1x4x4xf32, #tpu.memory_space<vmem>>, vector<1x4x4xf32>
      %40 = vector.shape_cast %39 : vector<1x4x4xf32> to vector<4x4xf32>
      %cst_33 = arith.constant 9.765625E-4 : f32
      %41 = vector.broadcast %cst_33 : f32 to vector<4x4xf32>
      %42 = arith.mulf %40, %41 : vector<4x4xf32>
      %43 = math.absf %42 : vector<4x4xf32>
      %cst_34 = arith.constant dense<0.000000e+00> : vector<4xf32>
      %44 = vector.multi_reduction <add>, %43, %cst_34 [1] : vector<4x4xf32> to vector<4xf32>
      %45 = vector.shape_cast %44 : vector<4xf32> to vector<4x1xf32>
      %cst_35 = arith.constant 9.99999996E-13 : f32
      %46 = vector.broadcast %cst_35 : f32 to vector<4x1xf32>
      %47 = arith.maximumf %45, %46 : vector<4x1xf32>
      %48 = tpu.reciprocal %47 : vector<4x1xf32> -> vector<4x1xf32>
      %49 = vector.broadcast %48 : vector<4x1xf32> to vector<4x4xf32>
      %50 = arith.mulf %42, %49 : vector<4x4xf32>
      %c0_36 = arith.constant 0 : index
      %c0_37 = arith.constant 0 : index
      %c0_38 = arith.constant 0 : index
      %51 = vector.load %arg5[%c0_36, %c0_37, %c0_38] : memref<1x4x4xf32, #tpu.memory_space<vmem>>, vector<1x4x4xf32>
      %52 = vector.shape_cast %51 : vector<1x4x4xf32> to vector<4x4xf32>
      %53 = vector.shape_cast %50 : vector<4x4xf32> to vector<1x4x4xf32>
      tpu.vector_store %arg5[%c0_36, %c0_37, %c0_38], %53 {strides = array<i32>} : memref<1x4x4xf32, #tpu.memory_space<vmem>>, vector<1x4x4xf32>,
    } else {
    }
    return
  }
  func.func @transform_0(%arg0: i32, %arg1: i32) -> (i32, i32, i32) {
    %c0_i32 = arith.constant 0 : i32
    %c0_i32_0 = arith.constant 0 : i32
    return %arg0, %c0_i32, %arg1 : i32, i32, i32
  }
  func.func @transform_1(%arg0: i32, %arg1: i32) -> (i32, i32, i32) {
    %c0_i32 = arith.constant 0 : i32
    %c0_i32_0 = arith.constant 0 : i32
    return %arg0, %c0_i32, %arg1 : i32, i32, i32
  }
  func.func @transform_2(%arg0: i32, %arg1: i32) -> (i32, i32, i32) {
    %c0_i32 = arith.constant 0 : i32
    %c0_i32_0 = arith.constant 0 : i32
    %c0_i32_1 = arith.constant 0 : i32
    return %arg0, %c0_i32, %c0_i32_0 : i32, i32, i32
  }
  func.func @transform_3(%arg0: i32, %arg1: i32) -> (i32, i32, i32) {
    %c0_i32 = arith.constant 0 : i32
    %c0_i32_0 = arith.constant 0 : i32
    %c0_i32_1 = arith.constant 0 : i32
    return %arg0, %c0_i32, %c0_i32_0 : i32, i32, i32
  }
}

</mosaic_0001>

<llo_original>
// kernel: tpu_custom_call.1
$region0: #{tpu_custom_call.1}
  #allocation0 [shape = 'u32[]', space=smem, size = 0x4, offset = 0x4, fixed_abs, tag = 'smem constant byte address 0x4 - core index']
  #allocation1 [shape = 'u32[144,128]{1,0:T(1,128)}', space=vmem, size = 0x12000, scoped, tag = 'internal scratch']
  %s0 = inlined_call_operand.hbm [shape: f32[2,4,256], index: 0, kind: input, shape index: {}]
  %s1 = inlined_call_operand.hbm [shape: f32[2,4,256], index: 1, kind: input, shape index: {}]
  %s2 = inlined_call_operand.hbm [shape: f32[2,4,4], index: 2, kind: output, shape index: {0}]
  %s3 = inlined_call_operand.hbm [shape: f32[2,4,4], index: 3, kind: output, shape index: {1}]
  %4 = xla_tuple %s2, %s3
  %s5 = sld [smem:[#allocation0]]
  $region65: #{tpu_custom_call.1} parent=0
    _
  %s7 = ssub.s32 1, %s5
  %s8 = scalar_select 0, %s7, %s5
  $region1: #{tpu_custom_call.1} parent=0
    #allocation2 [shape = 'u8[8192]{0}', space=vmem, size = 0x2000, scoped, tag = 'input window, operand 0']
    #allocation3 [shape = 's32[2]{0}', space=sflag, size = 0x8, scoped, tag = 'scoped memory for tpu_custom_call.1']
    #allocation4 [shape = 's32[2]{0}', space=sflag, size = 0x8, scoped, tag = 'scoped memory for tpu_custom_call.1']
    #allocation5 [shape = 'u8[8192]{0}', space=vmem, size = 0x2000, scoped, tag = 'input window, operand 1']
    #allocation6 [shape = 's32[2]{0}', space=sflag, size = 0x8, scoped, tag = 'scoped memory for tpu_custom_call.1']
    #allocation7 [shape = 'u8[4096]{0}', space=vmem, size = 0x1000, scoped, tag = 'output window, operand 0']
    #allocation8 [shape = 'u8[4096]{0}', space=vmem, size = 0x1000, scoped, tag = 'output window, operand 1']
    #allocation9 [shape = 's32[2]{0}', space=sflag, size = 0x8, scoped, tag = 'scoped memory for tpu_custom_call.1']
    %9 = vsyncpa [#allocation3], 0
    %s10 = scalar_lea.sflag [#allocation3], 1
    %11 = vsyncpa %s10, 0
    %12 = vsyncpa [#allocation6], 0
    %s13 = scalar_lea.sflag [#allocation6], 1
    %14 = vsyncpa %s13, 0
    %15 = vsyncpa [#allocation4], 0
    %s16 = scalar_lea.sflag [#allocation4], 1
    %17 = vsyncpa %s16, 0
    %18 = vsyncpa [#allocation9], 0
    %s19 = scalar_lea.sflag [#allocation9], 1
    %20 = vsyncpa %s19, 0
    loop: start=0, step=1, limit=4
    $region2: #{tpu_custom_call.1} parent=1 // loop_pre_header
      _
    $region3: #{tpu_custom_call.1} parent=1 // loop_header
      %s22 = sphi 0, %s26
      %p23 = scmp.ge.s32.totalorder %s22, 4
      %s29 = sphi 0, %s41
      %s30 = sphi 0, %s37
      %s31 = sphi 0, %s29
      %s32 = sphi 0, %s30
      %s33 = sphi 0, %s31
      %s34 = sphi 0, %s32
      %s46 = sphi 0, %s48
      %s49 = sphi 0, %s46
      %s50 = sphi 0, %s49
      %s66 = sphi 0, %s50
      %s74 = sphi 0, %s76
      %s77 = sphi 0, %s74
      %s78 = sphi 0, %s77
      %s94 = sphi 0, %s78
      %s100 = sphi 0, %s102
      %s103 = sphi 0, %s100
      %s104 = sphi 0, %s103
      %s120 = sphi 0, %s104
      %s126 = sphi 0, %s128
      %s129 = sphi 0, %s126
      %s130 = sphi 0, %s129
      %s146 = sphi 0, %s130
    $region4: #{tpu_custom_call.1} parent=1 // loop_header_branch
      %25 = sbr.rel (%p23) target = $region8
    $region5: #{tpu_custom_call.1} parent=1 // loop_body
      %s27 = ssub.s32 %s22, 1
      %s28 = ssub.s32 %s22, 2
      %s35 = sadd.s32 1, %s30
      %p36 = scmp.ge.s32.totalorder %s35, 1
      %s37 = scalar_select %p36, 0, %s35
      %s38 = sadd.s32 1, %s29
      %s39 = scalar_select %p36, %s38, %s29
      %p40 = scmp.ge.s32.totalorder %s39, 2
      %s41 = scalar_select %p40, 0, %s39
      %s42 = ssub.s32 %s29, %s41
      %s43 = ssub.s32 %s30, %s37
      %s44 = sor.u32 %s42, %s43
      %p45 = scmp.eq.s32.totalorder %s44, 0
      %s47 = sadd.s32 %s46, 1
      %s48 = scalar_select %p45, %s46, %s47
      %p51 = pneg %p45
      %p52 = scmp.eq.s32.totalorder %s22, 1
      %p53 = por %p51, %p52
      %p54 = scmp.ne.s32.totalorder %s46, %s49
      %p55 = scmp.eq.s32.totalorder %s22, 0
      %p56 = por %p54, %p55
      %p57 = scmp.ne.s32.totalorder %s46, %s49
      %p58 = scmp.eq.s32.totalorder %s27, 1
      %p59 = por %p57, %p58
      %p60 = scmp.ne.s32.totalorder %s49, %s50
      %p61 = scmp.eq.s32.totalorder %s27, 0
      %p62 = por %p60, %p61
      %p63 = scmp.ne.s32.totalorder %s49, %s50
      %p64 = scmp.eq.s32.totalorder %s28, 1
      %p65 = por %p63, %p64
      %p67 = scmp.ne.s32.totalorder %s50, %s66
      %p68 = scmp.eq.s32.totalorder %s28, 0
      %p69 = por %p67, %p68
      %s70 = ssub.s32 %s29, %s41
      %s71 = ssub.s32 %s30, %s37
      %s72 = sor.u32 %s70, %s71
      %p73 = scmp.eq.s32.totalorder %s72, 0
      %s75 = sadd.s32 %s74, 1
      %s76 = scalar_select %p73, %s74, %s75
      %p79 = pneg %p73
      %p80 = scmp.eq.s32.totalorder %s22, 1
      %p81 = por %p79, %p80
      %p82 = scmp.ne.s32.totalorder %s74, %s77
      %p83 = scmp.eq.s32.totalorder %s22, 0
      %p84 = por %p82, %p83
      %p85 = scmp.ne.s32.totalorder %s74, %s77
      %p86 = scmp.eq.s32.totalorder %s27, 1
      %p87 = por %p85, %p86
      %p88 = scmp.ne.s32.totalorder %s77, %s78
      %p89 = scmp.eq.s32.totalorder %s27, 0
      %p90 = por %p88, %p89
      %p91 = scmp.ne.s32.totalorder %s77, %s78
      %p92 = scmp.eq.s32.totalorder %s28, 1
      %p93 = por %p91, %p92
      %p95 = scmp.ne.s32.totalorder %s78, %s94
      %p96 = scmp.eq.s32.totalorder %s28, 0
      %p97 = por %p95, %p96
      %s98 = ssub.s32 %s29, %s41
      %p99 = scmp.eq.s32.totalorder %s98, 0
      %s101 = sadd.s32 %s100, 1
      %s102 = scalar_select %p99, %s100, %s101
      %p105 = pneg %p99
      %p106 = scmp.eq.s32.totalorder %s22, 1
      %p107 = por %p105, %p106
      %p108 = scmp.ne.s32.totalorder %s100, %s103
      %p109 = scmp.eq.s32.totalorder %s22, 0
      %p110 = por %p108, %p109
      %p111 = scmp.ne.s32.totalorder %s100, %s103
      %p112 = scmp.eq.s32.totalorder %s27, 1
      %p113 = por %p111, %p112
      %p114 = scmp.ne.s32.totalorder %s103, %s104
      %p115 = scmp.eq.s32.totalorder %s27, 0
      %p116 = por %p114, %p115
      %p117 = scmp.ne.s32.totalorder %s103, %s104
      %p118 = scmp.eq.s32.totalorder %s28, 1
      %p119 = por %p117, %p118
      %p121 = scmp.ne.s32.totalorder %s104, %s120
      %p122 = scmp.eq.s32.totalorder %s28, 0
      %p123 = por %p121, %p122
      %s124 = ssub.s32 %s29, %s41
      %p125 = scmp.eq.s32.totalorder %s124, 0
      %s127 = sadd.s32 %s126, 1
      %s128 = scalar_select %p125, %s126, %s127
      %p131 = pneg %p125
      %p132 = scmp.eq.s32.totalorder %s22, 1
      %p133 = por %p131, %p132
      %p134 = scmp.ne.s32.totalorder %s126, %s129
      %p135 = scmp.eq.s32.totalorder %s22, 0
      %p136 = por %p134, %p135
      %p137 = scmp.ne.s32.totalorder %s126, %s129
      %p138 = scmp.eq.s32.totalorder %s27, 1
      %p139 = por %p137, %p138
      %p140 = scmp.ne.s32.totalorder %s129, %s130
      %p141 = scmp.eq.s32.totalorder %s27, 0
      %p142 = por %p140, %p141
      %p143 = scmp.ne.s32.totalorder %s129, %s130
      %p144 = scmp.eq.s32.totalorder %s28, 1
      %p145 = por %p143, %p144
      %p147 = scmp.ne.s32.totalorder %s130, %s146
      %p148 = scmp.eq.s32.totalorder %s28, 0
      %p149 = por %p147, %p148
      %p150 = scmp.le.s32.totalorder 1, %s22
      %p151 = scmp.lt.s32.totalorder %s22, 3
      %p152 = pnand %p150, %p151
      %p153 = pneg %p152
      // Predicated region
      $region9: #{tpu_custom_call.1} parent=5 // pred_check
        _
      $region10: #{tpu_custom_call.1} parent=5 // pred_check_branch
        %155 = sbr.rel (%p152) target = $region12
      $region11: #{tpu_custom_call.1} parent=5 // pred_region
        %s156 = ssub.s32 %s22, 1
      $region12: #{tpu_custom_call.1} parent=5 // pred_fallthru
        _
      %p157 = scmp.lt.s32.totalorder %s22, 2
      // Predicated region
      $region13: #{tpu_custom_call.1} parent=5 // pred_check
        %p158 = pneg %p157
      $region14: #{tpu_custom_call.1} parent=5 // pred_check_branch
        %160 = sbr.rel (%p158) target = $region16
      $region15: #{tpu_custom_call.1} parent=5 // pred_region
        // Predicated region
        $region17: #{tpu_custom_call.1} parent=15 // pred_check
          %p161 = pneg %p56
        $region18: #{tpu_custom_call.1} parent=15 // pred_check_branch
          %163 = sbr.rel (%p161) target = $region20
        $region19: #{tpu_custom_call.1} parent=15 // pred_region
          %s164 = sand.u32 %s46, 1
          %s165 = scalar_lea.sflag [#allocation3], %s164
          %s166 = sand.u32 %s46, 1
          %s167 = smul.addr %s166, 8
          %s168 = scalar_lea.vmem [#allocation2], %s167
          %s169 = smul.u32 2, %s30
          %s171 = ssub.s32 128, 128
          %172 = vsyncadd %s165, %s171
          %s173 = smul.addr %s29, 2
          %s174 = sadd.s32 %s169, %s173
          %s175 = smul.addr %s174, 64
          %s176 = scalar_lea.hbm %s0, %s175
          %s178 = sshll.u32 %s168, 4
          %s179 = int_to_ptr.vmem [resolvable:$true] %s178
          %181 = dma.hbm_to_vmem [thread:$0]  %s176, 128, %s179, %s165
        $region20: #{tpu_custom_call.1} parent=15 // pred_fallthru
          _
        // Predicated region
        $region21: #{tpu_custom_call.1} parent=15 // pred_check
          %p182 = pneg %p84
        $region22: #{tpu_custom_call.1} parent=15 // pred_check_branch
          %184 = sbr.rel (%p182) target = $region24
        $region23: #{tpu_custom_call.1} parent=15 // pred_region
          %s185 = sand.u32 %s74, 1
          %s186 = scalar_lea.sflag [#allocation6], %s185
          %s187 = sand.u32 %s74, 1
          %s188 = smul.addr %s187, 8
          %s189 = scalar_lea.vmem [#allocation5], %s188
          %s190 = smul.u32 2, %s30
          %s192 = ssub.s32 128, 128
          %193 = vsyncadd %s186, %s192
          %s194 = smul.addr %s29, 2
          %s195 = sadd.s32 %s190, %s194
          %s196 = smul.addr %s195, 64
          %s197 = scalar_lea.hbm %s1, %s196
          %s199 = sshll.u32 %s189, 4
          %s200 = int_to_ptr.vmem [resolvable:$true] %s199
          %202 = dma.hbm_to_vmem [thread:$0]  %s197, 128, %s200, %s186
        $region24: #{tpu_custom_call.1} parent=15 // pred_fallthru
          _
      $region16: #{tpu_custom_call.1} parent=5 // pred_fallthru
        _
      %p203 = scmp.le.s32.totalorder 1, %s22
      %p204 = scmp.lt.s32.totalorder %s22, 3
      %p205 = pnand %p203, %p204
      %p206 = pneg %p205
      // Predicated region
      $region25: #{tpu_custom_call.1} parent=5 // pred_check
        _
      $region26: #{tpu_custom_call.1} parent=5 // pred_check_branch
        %208 = sbr.rel (%p205) target = $region28
      $region27: #{tpu_custom_call.1} parent=5 // pred_region
        %s209 = ssub.s32 %s22, 1
        %s210 = sand.u32 %s49, 1
        %s211 = scalar_lea.sflag [#allocation3], %s210
        %s212 = sand.u32 %s49, 1
        %s213 = smul.addr %s212, 8
        %s214 = scalar_lea.vmem [#allocation2], %s213
        // Predicated region
        $region29: #{tpu_custom_call.1} parent=27 // pred_check
          %p215 = pneg %p62
        $region30: #{tpu_custom_call.1} parent=27 // pred_check_branch
          %217 = sbr.rel (%p215) target = $region32
        $region31: #{tpu_custom_call.1} parent=27 // pred_region
          %218 = dma.done %s211, 128
        $region32: #{tpu_custom_call.1} parent=27 // pred_fallthru
          _
        %s219 = sand.u32 %s77, 1
        %s220 = scalar_lea.sflag [#allocation6], %s219
        %s221 = sand.u32 %s77, 1
        %s222 = smul.addr %s221, 8
        %s223 = scalar_lea.vmem [#allocation5], %s222
        // Predicated region
        $region33: #{tpu_custom_call.1} parent=27 // pred_check
          %p224 = pneg %p90
        $region34: #{tpu_custom_call.1} parent=27 // pred_check_branch
          %226 = sbr.rel (%p224) target = $region36
        $region35: #{tpu_custom_call.1} parent=27 // pred_region
          %227 = dma.done %s220, 128
        $region36: #{tpu_custom_call.1} parent=27 // pred_fallthru
          _
        %s228 = sand.u32 %s49, 1
        %s229 = scalar_lea.sflag [#allocation3], %s228
        %s230 = sand.u32 %s49, 1
        %s231 = smul.addr %s230, 8
        %s232 = scalar_lea.vmem [#allocation2], %s231
        %p233 = pneg %p62
        %p234 = pneg %p59
        %s235 = sand.u32 %s77, 1
        %s236 = scalar_lea.sflag [#allocation6], %s235
        %s237 = sand.u32 %s77, 1
        %s238 = smul.addr %s237, 8
        %s239 = scalar_lea.vmem [#allocation5], %s238
        %p240 = pneg %p90
        %p241 = pneg %p87
        %p242 = pneg %p116
        %p243 = pneg %p113
        %s244 = sand.u32 %s103, 1
        %s245 = scalar_lea.sflag [#allocation4], %s244
        %s246 = sand.u32 %s103, 1
        %s247 = smul.addr %s246, 4
        %s248 = scalar_lea.vmem [#allocation7], %s247
        %p249 = pneg %p142
        %p250 = pneg %p139
        %s251 = sand.u32 %s129, 1
        %s252 = scalar_lea.sflag [#allocation9], %s251
        %s253 = sand.u32 %s129, 1
        %s254 = smul.addr %s253, 4
        %s255 = scalar_lea.vmem [#allocation8], %s254
        %s256 = smul.u32 2, %s32
        %s257 = smul.u32 2, %s32
        %p258 = scmp.eq.s32.totalorder %s32, 0
        // Predicated region
        $region37: #{tpu_custom_call.1} parent=27 // pred_check
          %p259 = pneg %p258
        $region38: #{tpu_custom_call.1} parent=27 // pred_check_branch
          %261 = sbr.rel (%p259) target = $region40
        $region39: #{tpu_custom_call.1} parent=27 // pred_region
          %vm262 = vcmask 27648
          %263 = vst.msk [vmem:[%s248] sm:$0xf] %vm262, 0.0
          %264 = vst.msk [vmem:[%s255] sm:$0xf] %vm262, 0.0
        $region40: #{tpu_custom_call.1} parent=27 // pred_fallthru
          _
        %v265 = vld [vmem:[%s214] sm:$0xff]
        %v266 = vld [vmem:[%s248] sm:$0xf]
        %v268 = vcombine.high %v265, %v265
        %270 = vmatprep.subr.mxu0 %v268
        %271 = vmatpush1.xpose.msra.mxu0 %v265
        %272 = vmatprep.subr.mxu0 0.0
        %273 = vmatpush1.xpose.msra.mxu0 0.0
        %274 = vmatprep.subr.mxu0 0.0
        %275 = vmatpush1.xpose.msra.mxu0 0.0
        %276 = vmatprep.subr.mxu0 0.0
        %277 = vmatpush1.xpose.msra.mxu0 0.0
        %278 = vmatprep.subr.mxu0 0.0
        %279 = vmatpush1.xpose.msra.mxu0 0.0
        %280 = vmatprep.subr.mxu0 0.0
        %281 = vmatpush1.xpose.msra.mxu0 0.0
        %282 = vmatprep.subr.mxu0 0.0
        %283 = vmatpush1.xpose.msra.mxu0 0.0
        %284 = vmatprep.subr.mxu0 0.0
        %285 = vmatpush1.xpose.msra.mxu0 0.0
        %286 = vmatprep.subr.mxu0 0.0
        %287 = vmatpush1.xpose.msra.mxu0 0.0
        %288 = vmatprep.subr.mxu0 0.0
        %289 = vmatpush1.xpose.msra.mxu0 0.0
        %290 = vmatprep.subr.mxu0 0.0
        %291 = vmatpush1.xpose.msra.mxu0 0.0
        %292 = vmatprep.subr.mxu0 0.0
        %293 = vmatpush1.xpose.msra.mxu0 0.0
        %294 = vmatprep.subr.mxu0 0.0
        %295 = vmatpush1.xpose.msra.mxu0 0.0
        %296 = vmatprep.subr.mxu0 0.0
        %297 = vmatpush1.xpose.msra.mxu0 0.0
        %298 = vmatprep.subr.mxu0 0.0
        %299 = vmatpush1.xpose.msra.mxu0 0.0
        %300 = vmatprep.subr.mxu0 0.0
        %301 = vmatpush1.xpose.msra.mxu0 0.0
        %302 = vmatprep.subr.mxu0 0.0
        %303 = vmatpush1.xpose.msra.mxu0 0.0
        %304 = vmatprep.subr.mxu0 0.0
        %305 = vmatpush1.xpose.msra.mxu0 0.0
        %306 = vmatprep.subr.mxu0 0.0
        %307 = vmatpush1.xpose.msra.mxu0 0.0
        %308 = vmatprep.subr.mxu0 0.0
        %309 = vmatpush1.xpose.msra.mxu0 0.0
        %310 = vmatprep.subr.mxu0 0.0
        %311 = vmatpush1.xpose.msra.mxu0 0.0
        %312 = vmatprep.subr.mxu0 0.0
        %313 = vmatpush1.xpose.msra.mxu0 0.0
        %314 = vmatprep.subr.mxu0 0.0
        %315 = vmatpush1.xpose.msra.mxu0 0.0
        %316 = vmatprep.subr.mxu0 0.0
        %317 = vmatpush1.xpose.msra.mxu0 0.0
        %318 = vmatprep.subr.mxu0 0.0
        %319 = vmatpush1.xpose.msra.mxu0 0.0
        %320 = vmatprep.subr.mxu0 0.0
        %321 = vmatpush1.xpose.msra.mxu0 0.0
        %322 = vmatprep.subr.mxu0 0.0
        %323 = vmatpush1.xpose.msra.mxu0 0.0
        %324 = vmatprep.subr.mxu0 0.0
        %325 = vmatpush1.xpose.msra.mxu0 0.0
        %326 = vmatprep.subr.mxu0 0.0
        %327 = vmatpush1.xpose.msra.mxu0 0.0
        %328 = vmatprep.subr.mxu0 0.0
        %329 = vmatpush1.xpose.msra.mxu0 0.0
        %330 = vmatprep.subr.mxu0 0.0
        %331 = vmatpush1.xpose.msra.mxu0 0.0
        %332 = vmatprep.subr.mxu0 0.0
        %333 = vmatpush1.xpose.msra.mxu0 0.0
        %334 = vmatprep.mubr.f32.mxu0 %v268
        %335 = vmatmul.mubr.f32.gmra.mrb[0].mxu0 %v265
        %v336 = vpop.f32.mrb[0].mxu0
        %v337 = vadd.f32 0.0, %v336
        %v338 = vpop.f32.mrb[0].mxu0
        %339 = vdwg.mxu0
        %v340 = vadd.f32 %v266, %v337
        %vm341 = vcmask 27648
        %342 = vst.msk [vmem:[%s248] sm:$0xf] %vm341, %v340
        %v343 = vld [vmem:[%s223] sm:$0xff]
        %v344 = vld [vmem:[%s255] sm:$0xf]
        %v346 = vcombine.high %v343, %v343
        %348 = vmatprep.subr.mxu0 %v346
        %349 = vmatpush1.xpose.msra.mxu0 %v343
        %350 = vmatprep.subr.mxu0 0.0
        %351 = vmatpush1.xpose.msra.mxu0 0.0
        %352 = vmatprep.subr.mxu0 0.0
        %353 = vmatpush1.xpose.msra.mxu0 0.0
        %354 = vmatprep.subr.mxu0 0.0
        %355 = vmatpush1.xpose.msra.mxu0 0.0
        %356 = vmatprep.subr.mxu0 0.0
        %357 = vmatpush1.xpose.msra.mxu0 0.0
        %358 = vmatprep.subr.mxu0 0.0
        %359 = vmatpush1.xpose.msra.mxu0 0.0
        %360 = vmatprep.subr.mxu0 0.0
        %361 = vmatpush1.xpose.msra.mxu0 0.0
        %362 = vmatprep.subr.mxu0 0.0
        %363 = vmatpush1.xpose.msra.mxu0 0.0
        %364 = vmatprep.subr.mxu0 0.0
        %365 = vmatpush1.xpose.msra.mxu0 0.0
        %366 = vmatprep.subr.mxu0 0.0
        %367 = vmatpush1.xpose.msra.mxu0 0.0
        %368 = vmatprep.subr.mxu0 0.0
        %369 = vmatpush1.xpose.msra.mxu0 0.0
        %370 = vmatprep.subr.mxu0 0.0
        %371 = vmatpush1.xpose.msra.mxu0 0.0
        %372 = vmatprep.subr.mxu0 0.0
        %373 = vmatpush1.xpose.msra.mxu0 0.0
        %374 = vmatprep.subr.mxu0 0.0
        %375 = vmatpush1.xpose.msra.mxu0 0.0
        %376 = vmatprep.subr.mxu0 0.0
        %377 = vmatpush1.xpose.msra.mxu0 0.0
        %378 = vmatprep.subr.mxu0 0.0
        %379 = vmatpush1.xpose.msra.mxu0 0.0
        %380 = vmatprep.subr.mxu0 0.0
        %381 = vmatpush1.xpose.msra.mxu0 0.0
        %382 = vmatprep.subr.mxu0 0.0
        %383 = vmatpush1.xpose.msra.mxu0 0.0
        %384 = vmatprep.subr.mxu0 0.0
        %385 = vmatpush1.xpose.msra.mxu0 0.0
        %386 = vmatprep.subr.mxu0 0.0
        %387 = vmatpush1.xpose.msra.mxu0 0.0
        %388 = vmatprep.subr.mxu0 0.0
        %389 = vmatpush1.xpose.msra.mxu0 0.0
        %390 = vmatprep.subr.mxu0 0.0
        %391 = vmatpush1.xpose.msra.mxu0 0.0
        %392 = vmatprep.subr.mxu0 0.0
        %393 = vmatpush1.xpose.msra.mxu0 0.0
        %394 = vmatprep.subr.mxu0 0.0
        %395 = vmatpush1.xpose.msra.mxu0 0.0
        %396 = vmatprep.subr.mxu0 0.0
        %397 = vmatpush1.xpose.msra.mxu0 0.0
        %398 = vmatprep.subr.mxu0 0.0
        %399 = vmatpush1.xpose.msra.mxu0 0.0
        %400 = vmatprep.subr.mxu0 0.0
        %401 = vmatpush1.xpose.msra.mxu0 0.0
        %402 = vmatprep.subr.mxu0 0.0
        %403 = vmatpush1.xpose.msra.mxu0 0.0
        %404 = vmatprep.subr.mxu0 0.0
        %405 = vmatpush1.xpose.msra.mxu0 0.0
        %406 = vmatprep.subr.mxu0 0.0
        %407 = vmatpush1.xpose.msra.mxu0 0.0
        %408 = vmatprep.subr.mxu0 0.0
        %409 = vmatpush1.xpose.msra.mxu0 0.0
        %410 = vmatprep.subr.mxu0 0.0
        %411 = vmatpush1.xpose.msra.mxu0 0.0
        %412 = vmatprep.mubr.f32.mxu0 %v346
        %413 = vmatmul.mubr.f32.gmra.mrb[0].mxu0 %v343
        %v414 = vpop.f32.mrb[0].mxu0
        %v415 = vadd.f32 0.0, %v414
        %v416 = vpop.f32.mrb[0].mxu0
        %417 = vdwg.mxu0
        %v418 = vadd.f32 %v344, %v415
        %419 = vst.msk [vmem:[%s255] sm:$0xf] %vm341, %v418
        // Predicated region
        $region41: #{tpu_custom_call.1} parent=27 // pred_check
          %p420 = pneg %p258
        $region42: #{tpu_custom_call.1} parent=27 // pred_check_branch
          %422 = sbr.rel (%p420) target = $region44
        $region43: #{tpu_custom_call.1} parent=27 // pred_region
          %v423 = vld [vmem:[%s248] sm:$0xf]
          %v424 = vmul.f32 %v423, 0.0009765625
          %v425 = vand.u32 2147483647, %v424
          %v426 = vsel %vm341, %v425, 0.0
          %427 = vadd.xlane.f32.xlu0 %v426
          %v428 = vpop.xlane.xlu0 %427
          %v429 = vmax.f32 %v428, 1e-12
          %v430 = vrcp.pop %v429
          %v431 = vmul.f32 %v424, %v430
          %432 = vst.msk [vmem:[%s248] sm:$0xf] %vm341, %v431
          %v433 = vld [vmem:[%s255] sm:$0xf]
          %v434 = vmul.f32 %v433, 0.0009765625
          %v435 = vand.u32 2147483647, %v434
          %v436 = vsel %vm341, %v435, 0.0
          %437 = vadd.xlane.f32.xlu0 %v436
          %v438 = vpop.xlane.xlu0 %437
          %v439 = vmax.f32 %v438, 1e-12
          %v440 = vrcp.pop %v439
          %v441 = vmul.f32 %v434, %v440
          %442 = vst.msk [vmem:[%s255] sm:$0xf] %vm341, %v441
        $region44: #{tpu_custom_call.1} parent=27 // pred_fallthru
          _
        %s443 = sand.u32 %s103, 1
        %s444 = scalar_lea.sflag [#allocation4], %s443
        %s445 = sand.u32 %s103, 1
        %s446 = smul.addr %s445, 4
        %s447 = scalar_lea.vmem [#allocation7], %s446
        %s448 = sand.u32 %s129, 1
        %s449 = scalar_lea.sflag [#allocation9], %s448
        %s450 = sand.u32 %s129, 1
        %s451 = smul.addr %s450, 4
        %s452 = scalar_lea.vmem [#allocation8], %s451
        // Predicated region
        $region45: #{tpu_custom_call.1} parent=27 // pred_check
          %p453 = pneg %p113
        $region46: #{tpu_custom_call.1} parent=27 // pred_check_branch
          %455 = sbr.rel (%p453) target = $region48
        $region47: #{tpu_custom_call.1} parent=27 // pred_region
          %s457 = ssub.s32 64, 64
          %458 = vsyncadd %s444, %s457
          %s459 = smul.addr %s31, 64
          %s460 = scalar_lea.hbm %s2, %s459
          %s462 = sshll.u32 %s447, 4
          %s463 = int_to_ptr.vmem [resolvable:$true] %s462
          %465 = dma.vmem_to_hbm [thread:$0]  %s463, 64, %s460, %s444
        $region48: #{tpu_custom_call.1} parent=27 // pred_fallthru
          _
        // Predicated region
        $region49: #{tpu_custom_call.1} parent=27 // pred_check
          %p466 = pneg %p139
        $region50: #{tpu_custom_call.1} parent=27 // pred_check_branch
          %468 = sbr.rel (%p466) target = $region52
        $region51: #{tpu_custom_call.1} parent=27 // pred_region
          %s470 = ssub.s32 64, 64
          %471 = vsyncadd %s449, %s470
          %s472 = smul.addr %s31, 64
          %s473 = scalar_lea.hbm %s3, %s472
          %s475 = sshll.u32 %s452, 4
          %s476 = int_to_ptr.vmem [resolvable:$true] %s475
          %478 = dma.vmem_to_hbm [thread:$0]  %s476, 64, %s473, %s449
        $region52: #{tpu_custom_call.1} parent=27 // pred_fallthru
          _
      $region28: #{tpu_custom_call.1} parent=5 // pred_fallthru
        _
      %p479 = scmp.le.s32.totalorder 2, %s22
      // Predicated region
      $region53: #{tpu_custom_call.1} parent=5 // pred_check
        %p480 = pneg %p479
      $region54: #{tpu_custom_call.1} parent=5 // pred_check_branch
        %482 = sbr.rel (%p480) target = $region56
      $region55: #{tpu_custom_call.1} parent=5 // pred_region
        %s483 = ssub.s32 %s22, 2
        // Predicated region
        $region57: #{tpu_custom_call.1} parent=55 // pred_check
          %p484 = pneg %p119
        $region58: #{tpu_custom_call.1} parent=55 // pred_check_branch
          %486 = sbr.rel (%p484) target = $region60
        $region59: #{tpu_custom_call.1} parent=55 // pred_region
          %s487 = sand.u32 %s104, 1
          %s488 = scalar_lea.sflag [#allocation4], %s487
          %s489 = sand.u32 %s104, 1
          %s490 = smul.addr %s489, 4
          %s491 = scalar_lea.vmem [#allocation7], %s490
          %492 = dma.done %s488, 64
        $region60: #{tpu_custom_call.1} parent=55 // pred_fallthru
          _
        // Predicated region
        $region61: #{tpu_custom_call.1} parent=55 // pred_check
          %p493 = pneg %p145
        $region62: #{tpu_custom_call.1} parent=55 // pred_check_branch
          %495 = sbr.rel (%p493) target = $region64
        $region63: #{tpu_custom_call.1} parent=55 // pred_region
          %s496 = sand.u32 %s130, 1
          %s497 = scalar_lea.sflag [#allocation9], %s496
          %s498 = sand.u32 %s130, 1
          %s499 = smul.addr %s498, 4
          %s500 = scalar_lea.vmem [#allocation8], %s499
          %501 = dma.done %s497, 64
        $region64: #{tpu_custom_call.1} parent=55 // pred_fallthru
          _
      $region56: #{tpu_custom_call.1} parent=5 // pred_fallthru
        _
    $region6: #{tpu_custom_call.1} parent=1 // loop_footer
      %s26 = sadd.s32 1, %s22
    $region7: #{tpu_custom_call.1} parent=1 // loop_footer_branch
      %21 = sbr.rel target = $region3
    $region8: #{tpu_custom_call.1} parent=1 // loop_exit
      _
    %502 = vsyncpa [#allocation3], 1
    %s503 = scalar_lea.sflag [#allocation3], 1
    %504 = vsyncpa %s503, 1
    %505 = vsyncpa [#allocation6], 1
    %s506 = scalar_lea.sflag [#allocation6], 1
    %507 = vsyncpa %s506, 1
    %508 = vsyncpa [#allocation4], 1
    %s509 = scalar_lea.sflag [#allocation4], 1
    %510 = vsyncpa %s509, 1
    %511 = vsyncpa [#allocation9], 1
    %s512 = scalar_lea.sflag [#allocation9], 1
    %513 = vsyncpa %s512, 1

</llo_original>
